<compile_context>
chip_gen: v7x
topology: tpu7x:2x2x1
jax: 0.10.0
libtpu: 0.0.40
codegen_flags: <defaults>
</compile_context>

<pallas_src>
import math
import functools

import jax
import jax.numpy as jnp
from jax.experimental import pallas as pl
from jax.experimental.pallas import tpu as pltpu

# GELU(tanh) constants, pre-folded:  gelu(h) = 0.5*h*(1 + tanh(h*(A + B*h^2)))
_GELU_A = math.sqrt(2.0 / math.pi)
_GELU_B = math.sqrt(2.0 / math.pi) * 0.044715


def _mlp_kernel(x_ref, w1_ref, b1_ref, w2_ref, b2_ref, o_ref, acc_ref):
    # x_ref  : (TM, D)   activation tile (compute dtype, e.g. bf16)
    # w1_ref : (D, TH)   c_fc weight column tile
    # b1_ref : (1, TH)   c_fc bias slice (f32)
    # w2_ref : (TH, D)   c_proj weight row tile
    # b2_ref : (1, D)    c_proj bias (f32)
    # o_ref  : (TM, D)   output tile (written once, at the last hidden step)
    # acc_ref: (TM, D)   f32 VMEM accumulator, persists across the hidden axis
    h_idx = pl.program_id(1)

    @pl.when(h_idx == 0)
    def _():
        # Fold c_proj bias into the accumulator init: saves a full (TM, D)
        # f32 VPU pass + broadcast in the epilogue.
        acc_ref[...] = jnp.broadcast_to(b2_ref[...], acc_ref.shape)

    # c_fc chunk: (TM, TH), f32 accumulation on the MXU.
    h = jnp.dot(x_ref[...], w1_ref[...], preferred_element_type=jnp.float32)
    h = h + b1_ref[...]

    # GELU with tanh approximation (matches nn.GELU(approximate='tanh')), in
    # f32.  Inner polynomial written as h*(A + B*h^2) with pre-folded constants
    # (fewer VPU ops); the tanh sits on the EUP slot and overlaps MXU work.
    g = 0.5 * h * (1.0 + jnp.tanh(h * (_GELU_A + _GELU_B * (h * h))))

    # c_proj partial product, accumulated over hidden tiles.
    acc_ref[...] += jnp.dot(g.astype(w2_ref.dtype), w2_ref[...],
                            preferred_element_type=jnp.float32)

    # Finalize: emit once in the output dtype (b2 already folded into acc).
    @pl.when(h_idx == pl.num_programs(1) - 1)
    def _():
        o_ref[...] = acc_ref[...].astype(o_ref.dtype)


def _round_up(v, m):
    return -(-v // m) * m


def _tm_candidates(tm0, align):
    """tm0, ~tm0/2, ... down to `align`, each a multiple of `align`, descending."""
    cands = []
    t = tm0
    while t >= align:
        cands.append(t)
        nt = _round_up(t // 2, align)
        if nt >= t:
            break
        t = nt
    return cands or [align]


def _choose_tiles(M, D, H, itemsize, out_itemsize, tm_target, th_target, budget):
    """Pick (tm, th, m_pad) honouring the VMEM budget.

    Preference order (roofline-driven):
      1. weight-resident: th == H, so W1/W2 are fetched from HBM exactly once;
      2. otherwise the largest tm that fits (tm alone sets flops/byte of the
         weight stream), then the largest th that still fits.
    """
    sublane = max(8, 32 // itemsize)   # 8 rows for f32, 16 for bf16 packing

    def footprint(tm, th):
        w = 2 * (2 * D * th * itemsize)                 # W1 + W2, double-buffered
        xio = 2 * tm * D * (itemsize + out_itemsize)    # x + out, double-buffered
        acc = tm * D * 4                                # f32 accumulator scratch
        inter = tm * th * (4 + itemsize)                # h (f32) + g (compute dtype)
        bias = 2 * (th + D) * 4
        return w + xio + acc + inter + bias

    # Row-tile start: capped at padded M; MXU-(256)-aligned when big enough.
    tm0 = min(tm_target, _round_up(M, sublane))
    if tm0 >= 256:
        tm0 = (tm0 // 256) * 256
    else:
        tm0 = _round_up(tm0, sublane)
    tm_cands = _tm_candidates(tm0, sublane)

    # Hidden-tile candidates: lane-aligned divisors of H (plus H itself), desc.
    th_cap = H if th_target is None else min(th_target, H)
    th_cands = [t for t in range(128, H + 1, 128) if H % t == 0 and t <= th_cap]
    if th_cap >= H:
        th_cands.append(H)
    if not th_cands:
        th_cands = [H]                      # full-extent block is always legal
    th_cands = sorted(set(th_cands), reverse=True)

    tm, th = tm_cands[-1], min(th_cands)    # worst-case fallback
    found = False

    # Path A: weight-resident (weights DMAed once, kernel compute-bound).
    if th_cands[0] == H:
        tm_floor = min(128, tm0)
        for t in tm_cands:
            if t >= tm_floor and footprint(t, H) <= budget:
                tm, th, found = t, H, True
                break

    # Path B: streamed weights -- biggest tm first (intensity), then biggest th.
    if not found:
        for t in tm_cands:
            for c in th_cands:
                if footprint(t, c) <= budget:
                    tm, th, found = t, c, True
                    break
            if found:
                break

    # Megacore (v7x): ensure >= 2 row tiles so both TensorCores get work.
    if _round_up(M, tm) // tm < 2:
        half = _round_up(-(-M // 2), sublane)
        if sublane <= half < tm and footprint(half, th) <= budget:
            tm = half

    m_pad = _round_up(M, tm)
    return tm, th, m_pad


@functools.partial(
    jax.jit,
    static_argnames=("compute_dtype", "tm_target", "th_target",
                     "vmem_limit_bytes"))
def mlp_forward(x, w1, b1, w2, b2, *, compute_dtype=jnp.bfloat16,
                tm_target=512, th_target=None, vmem_limit_bytes=None):
    """x: (B, T, D). w1: (D, 4D), b1: (4D,), w2: (4D, D), b2: (D,).

    th_target=None means "prefer the weight-resident configuration (th == H)
    whenever the double-buffered W1/W2 fit the VMEM budget"; otherwise tiles
    are sized to maximise tm (the flops/byte of the weight stream).
    vmem_limit_bytes defaults to 48 MiB (safe on v7x's 64 MiB per-core VMEM;
    raise toward ~96 MiB on v5e/v6e for larger tiles).
    """
    B, T, D = x.shape
    H = w1.shape[1]
    M = B * T
    out_dtype = x.dtype

    itemsize = jnp.dtype(compute_dtype).itemsize
    out_itemsize = jnp.dtype(out_dtype).itemsize

    if vmem_limit_bytes is None:
        vmem_limit_bytes = 48 * 1024 * 1024
    budget = int(vmem_limit_bytes * 0.85)     # headroom for compiler temporaries

    tm, th, m_pad = _choose_tiles(M, D, H, itemsize, out_itemsize,
                                  tm_target, th_target, budget)
    grid_m = m_pad // tm
    grid_h = H // th
    grid = (grid_m, grid_h)

    # Flatten rows; pad M to a tile multiple (padded rows are zeros, sliced off
    # after the call) instead of silently falling back to a full-extent tile.
    x2d = x.reshape(M, D).astype(compute_dtype)
    if m_pad != M:
        x2d = jnp.pad(x2d, ((0, m_pad - M), (0, 0)))
    w1c = w1.astype(compute_dtype)
    w2c = w2.astype(compute_dtype)
    b1_2d = b1.reshape(1, H).astype(jnp.float32)
    b2_2d = b2.reshape(1, D).astype(jnp.float32)

    # Weights cross HBM once when th == H (constant block index); otherwise the
    # whole weight matrices are re-streamed for every row tile.
    weight_passes = 1 if grid_h == 1 else grid_m
    cost = pl.CostEstimate(
        flops=4 * m_pad * D * H,                 # two matmuls, 2*M*D*H each
        transcendentals=m_pad * H,               # tanh in the GELU
        bytes_accessed=(m_pad * D * itemsize
                        + weight_passes * 2 * D * H * itemsize
                        + (H + D) * 4
                        + m_pad * D * out_itemsize))

    # NOTE: when th == H the weight blocks could additionally be single-buffered
    # (pipeline_mode=pl.Buffered(1)) to halve their VMEM footprint; omitted here
    # for portability, and the footprint model already budgets two buffers.
    out2d = pl.pallas_call(
        _mlp_kernel,
        out_shape=jax.ShapeDtypeStruct((m_pad, D), out_dtype),
        grid_spec=pltpu.PrefetchScalarGridSpec(
            num_scalar_prefetch=0,
            grid=grid,
            in_specs=[
                pl.BlockSpec((tm, D), lambda i, h: (i, 0)),   # x row tile
                pl.BlockSpec((D, th), lambda i, h: (0, h)),   # W1 column tile
                pl.BlockSpec((1, th), lambda i, h: (0, h)),   # b1 slice
                pl.BlockSpec((th, D), lambda i, h: (h, 0)),   # W2 row tile
                pl.BlockSpec((1, D), lambda i, h: (0, 0)),    # b2
            ],
            out_specs=pl.BlockSpec((tm, D), lambda i, h: (i, 0)),
            scratch_shapes=[pltpu.VMEM((tm, D), jnp.float32)],
        ),
        compiler_params=pltpu.CompilerParams(
            dimension_semantics=("parallel", "arbitrary"),
            vmem_limit_bytes=int(vmem_limit_bytes),
        ),
        cost_estimate=cost,
    )(x2d, w1c, b1_2d, w2c, b2_2d)

    if m_pad != M:
        out2d = out2d[:M]
    return out2d.reshape(B, T, D)


def _reference_mlp(x, w1, b1, w2, b2):
    h = jnp.einsum("btd,dh->bth", x, w1) + b1
    c = math.sqrt(2.0 / math.pi)
    g = 0.5 * h * (1.0 + jnp.tanh(c * (h + 0.044715 * h ** 3)))
    return jnp.einsum("bth,hd->btd", g, w2) + b2


if __name__ == "__main__":
    # Small GPT-like config: D=128, H=4*D=512, M=128 rows.
    B, T, D = 2, 64, 128
    H = 4 * D

    key = jax.random.PRNGKey(0)
    kx, k1, kb1, k2, kb2 = jax.random.split(key, 5)

    x = jax.random.normal(kx, (B, T, D), dtype=jnp.float32)
    w1 = jax.random.normal(k1, (D, H), dtype=jnp.float32) * 0.02
    b1 = jax.random.normal(kb1, (H,), dtype=jnp.float32) * 0.02
    w2 = jax.random.normal(k2, (H, D), dtype=jnp.float32) * 0.02
    b2 = jax.random.normal(kb2, (D,), dtype=jnp.float32) * 0.02

    ref = _reference_mlp(x, w1, b1, w2, b2)

    # f32 MXU path with small tiles -> grid (2, 4): tight correctness check of
    # the tiled hidden-axis accumulation and pl.when init/finalize.
    out_f32 = mlp_forward(x, w1, b1, w2, b2, compute_dtype=jnp.float32,
                          tm_target=64, th_target=128)
    out_f32 = jax.block_until_ready(out_f32)
    assert out_f32.shape == (B, T, D)
    assert jnp.allclose(out_f32, ref, atol=1e-4, rtol=1e-4), "f32 mismatch"

    # Default (performance) configuration: bf16 MXU inputs, weight-resident
    # th == H, megacore-split row tiles. Loose tolerance for bf16.
    out_bf16 = mlp_forward(x, w1, b1, w2, b2)
    out_bf16 = jax.block_until_ready(out_bf16)
    assert out_bf16.shape == (B, T, D)
    assert jnp.allclose(out_bf16, ref, atol=1e-2, rtol=1e-2), "bf16 mismatch"

    # Row count not a multiple of the tile (M = 120): exercises the zero-pad /
    # slice path that replaced the full-extent fallback.
    x_odd = x[:, :60, :]
    ref_odd = _reference_mlp(x_odd, w1, b1, w2, b2)
    out_odd = mlp_forward(x_odd, w1, b1, w2, b2, compute_dtype=jnp.float32,
                          tm_target=64)
    out_odd = jax.block_until_ready(out_odd)
    assert out_odd.shape == (2, 60, D)
    assert jnp.allclose(out_odd, ref_odd, atol=1e-4, rtol=1e-4), "padded mismatch"

    print("KERNEL_OK")
</pallas_src>

<mosaic_0001>
module attributes {stable_mosaic.version = 11 : i64} {
  func.func @_mlp_kernel(%arg0: i32, %arg1: i32, %arg2: memref<64x128xf32, #tpu.memory_space<vmem>>, %arg3: memref<128x128xf32, #tpu.memory_space<vmem>>, %arg4: memref<1x128xf32, #tpu.memory_space<vmem>>, %arg5: memref<128x128xf32, #tpu.memory_space<vmem>>, %arg6: memref<1x128xf32, #tpu.memory_space<vmem>>, %arg7: memref<64x128xf32, #tpu.memory_space<vmem>>, %arg8: memref<64x128xf32, #tpu.memory_space<vmem>>) attributes {dimension_semantics = [#tpu.dimension_semantics<parallel>, #tpu.dimension_semantics<arbitrary>], iteration_bounds = array<i64: 2, 4>, scalar_prefetch = 0 : i64, scratch_operands = 1 : i64, tpu.core_type = #tpu.core_type<tc>, window_params = [{transform_indices = @transform_0, window_bounds = array<i64: 64, 128>}, {transform_indices = @transform_1, window_bounds = array<i64: 128, 128>}, {transform_indices = @transform_2, window_bounds = array<i64: 1, 128>}, {transform_indices = @transform_3, window_bounds = array<i64: 128, 128>}, {pipeline_mode = #tpu.pipeline_mode<synchronous>, transform_indices = @transform_4, window_bounds = array<i64: 1, 128>}, {transform_indices = @transform_5, window_bounds = array<i64: 64, 128>}]} {
    %c0_i32 = arith.constant 0 : i32
    %0 = arith.cmpi eq, %arg1, %c0_i32 : i32
    %1 = arith.extui %0 : i1 to i32
    %c0_i32_0 = arith.constant 0 : i32
    %2 = arith.cmpi ne, %1, %c0_i32_0 : i32
    scf.if %2 {
      %c0_18 = arith.constant 0 : index
      %c0_19 = arith.constant 0 : index
      %29 = vector.load %arg6[%c0_18, %c0_19] : memref<1x128xf32, #tpu.memory_space<vmem>>, vector<1x128xf32>
      %30 = vector.shape_cast %29 : vector<1x128xf32> to vector<1x128xf32>
      %31 = vector.broadcast %30 : vector<1x128xf32> to vector<64x128xf32>
      %c0_20 = arith.constant 0 : index
      %c0_21 = arith.constant 0 : index
      %32 = vector.load %arg8[%c0_20, %c0_21] : memref<64x128xf32, #tpu.memory_space<vmem>>, vector<64x128xf32>
      tpu.vector_store %arg8[%c0_20, %c0_21], %31 {strides = array<i32>} : memref<64x128xf32, #tpu.memory_space<vmem>>, vector<64x128xf32>,
    } else {
    }
    %c0 = arith.constant 0 : index
    %c0_1 = arith.constant 0 : index
    %3 = vector.load %arg2[%c0, %c0_1] : memref<64x128xf32, #tpu.memory_space<vmem>>, vector<64x128xf32>
    %c0_2 = arith.constant 0 : index
    %c0_3 = arith.constant 0 : index
    %4 = vector.load %arg3[%c0_2, %c0_3] : memref<128x128xf32, #tpu.memory_space<vmem>>, vector<128x128xf32>
    %cst = arith.constant dense<0.000000e+00> : vector<64x128xf32>
    %5 = tpu.matmul %3, %4, %cst {dimension_numbers = #tpu.dot_dimension_numbers<[1], [0], [0], [1], [0, 0, 1, 1], [], []>} : vector<64x128xf32>, vector<128x128xf32>, vector<64x128xf32> -> vector<64x128xf32>
    %c0_4 = arith.constant 0 : index
    %c0_5 = arith.constant 0 : index
    %6 = vector.load %arg4[%c0_4, %c0_5] : memref<1x128xf32, #tpu.memory_space<vmem>>, vector<1x128xf32>
    %7 = vector.broadcast %6 : vector<1x128xf32> to vector<64x128xf32>
    %8 = arith.addf %5, %7 : vector<64x128xf32>
    %cst_6 = arith.constant 5.000000e-01 : f32
    %9 = vector.broadcast %cst_6 : f32 to vector<64x128xf32>
    %10 = arith.mulf %9, %8 : vector<64x128xf32>
    %11 = arith.mulf %8, %8 : vector<64x128xf32>
    %cst_7 = arith.constant 0.0356774069 : f32
    %12 = vector.broadcast %cst_7 : f32 to vector<64x128xf32>
    %13 = arith.mulf %12, %11 : vector<64x128xf32>
    %cst_8 = arith.constant 0.797884583 : f32
    %14 = vector.broadcast %cst_8 : f32 to vector<64x128xf32>
    %15 = arith.addf %14, %13 : vector<64x128xf32>
    %16 = arith.mulf %8, %15 : vector<64x128xf32>
    %17 = math.tanh %16 : vector<64x128xf32>
    %cst_9 = arith.constant 1.000000e+00 : f32
    %18 = vector.broadcast %cst_9 : f32 to vector<64x128xf32>
    %19 = arith.addf %18, %17 : vector<64x128xf32>
    %20 = arith.mulf %10, %19 : vector<64x128xf32>
    %c0_10 = arith.constant 0 : index
    %c0_11 = arith.constant 0 : index
    %21 = vector.load %arg8[%c0_10, %c0_11] : memref<64x128xf32, #tpu.memory_space<vmem>>, vector<64x128xf32>
    %c0_12 = arith.constant 0 : index
    %c0_13 = arith.constant 0 : index
    %22 = vector.load %arg5[%c0_12, %c0_13] : memref<128x128xf32, #tpu.memory_space<vmem>>, vector<128x128xf32>
    %cst_14 = arith.constant dense<0.000000e+00> : vector<64x128xf32>
    %23 = tpu.matmul %20, %22, %cst_14 {dimension_numbers = #tpu.dot_dimension_numbers<[1], [0], [0], [1], [0, 0, 1, 1], [], []>} : vector<64x128xf32>, vector<128x128xf32>, vector<64x128xf32> -> vector<64x128xf32>
    %24 = arith.addf %21, %23 : vector<64x128xf32>
    %c0_15 = arith.constant 0 : index
    %c0_16 = arith.constant 0 : index
    %25 = vector.load %arg8[%c0_15, %c0_16] : memref<64x128xf32, #tpu.memory_space<vmem>>, vector<64x128xf32>
    tpu.vector_store %arg8[%c0_15, %c0_16], %24 {strides = array<i32>} : memref<64x128xf32, #tpu.memory_space<vmem>>, vector<64x128xf32>,
    %c3_i32 = arith.constant 3 : i32
    %26 = arith.cmpi eq, %arg1, %c3_i32 : i32
    %27 = arith.extui %26 : i1 to i32
    %c0_i32_17 = arith.constant 0 : i32
    %28 = arith.cmpi ne, %27, %c0_i32_17 : i32
    scf.if %28 {
      %c0_18 = arith.constant 0 : index
      %c0_19 = arith.constant 0 : index
      %29 = vector.load %arg8[%c0_18, %c0_19] : memref<64x128xf32, #tpu.memory_space<vmem>>, vector<64x128xf32>
      %c0_20 = arith.constant 0 : index
      %c0_21 = arith.constant 0 : index
      %30 = vector.load %arg7[%c0_20, %c0_21] : memref<64x128xf32, #tpu.memory_space<vmem>>, vector<64x128xf32>
      tpu.vector_store %arg7[%c0_20, %c0_21], %29 {strides = array<i32>} : memref<64x128xf32, #tpu.memory_space<vmem>>, vector<64x128xf32>,
    } else {
    }
    return
  }
  func.func @transform_0(%arg0: i32, %arg1: i32) -> (i32, i32) {
    %c0_i32 = arith.constant 0 : i32
    %c0_i32_0 = arith.constant 0 : i32
    return %arg0, %c0_i32 : i32, i32
  }
  func.func @transform_1(%arg0: i32, %arg1: i32) -> (i32, i32) {
    %c0_i32 = arith.constant 0 : i32
    %c0_i32_0 = arith.constant 0 : i32
    return %c0_i32, %arg1 : i32, i32
  }
  func.func @transform_2(%arg0: i32, %arg1: i32) -> (i32, i32) {
    %c0_i32 = arith.constant 0 : i32
    %c0_i32_0 = arith.constant 0 : i32
    return %c0_i32, %arg1 : i32, i32
  }
  func.func @transform_3(%arg0: i32, %arg1: i32) -> (i32, i32) {
    %c0_i32 = arith.constant 0 : i32
    %c0_i32_0 = arith.constant 0 : i32
    return %arg1, %c0_i32 : i32, i32
  }
  func.func @transform_4(%arg0: i32, %arg1: i32) -> (i32, i32) {
    %c0_i32 = arith.constant 0 : i32
    %c0_i32_0 = arith.constant 0 : i32
    %c0_i32_1 = arith.constant 0 : i32
    return %c0_i32, %c0_i32_0 : i32, i32
  }
  func.func @transform_5(%arg0: i32, %arg1: i32) -> (i32, i32) {
    %c0_i32 = arith.constant 0 : i32
    %c0_i32_0 = arith.constant 0 : i32
    return %arg0, %c0_i32 : i32, i32
  }
}

</mosaic_0001>

<llo_original>
// kernel: mlp_forward.1
$region0: #{mlp_forward.1}
  #allocation0 [shape = 'u32[]', space=smem, size = 0x4, offset = 0x4, fixed_abs, tag = 'smem constant byte address 0x4 - core index']
  #allocation1 [shape = 'u32[144,128]{1,0:T(1,128)}', space=vmem, size = 0x12000, scoped, tag = 'internal scratch']
  #allocation2 [shape = 'f32[64,128]{1,0:T(8,128)}', space=vmem, size = 0x8000, scoped, tag = 'scratch operand']
  %s0 = inlined_call_operand.hbm [shape: f32[128,128], index: 0, kind: input, shape index: {}]
  %s1 = inlined_call_operand.hbm [shape: f32[128,512], index: 1, kind: input, shape index: {}]
  %s2 = inlined_call_operand.vmem [shape: f32[1,512], index: 2, kind: input, shape index: {}]
  %s3 = inlined_call_operand.hbm [shape: f32[512,128], index: 3, kind: input, shape index: {}]
  %s4 = inlined_call_operand.vmem [shape: f32[1,128], index: 4, kind: input, shape index: {}]
  %s5 = inlined_call_operand.hbm [shape: f32[128,128], index: 5, kind: output, shape index: {}]
  %s6 = sld [smem:[#allocation0]]
  $region73: #{mlp_forward.1} parent=0
    _
  %s8 = ssub.s32 1, %s6
  %s9 = scalar_select 0, %s8, %s6
  $region1: #{mlp_forward.1} parent=0
    #allocation3 [shape = 'u8[65536]{0}', space=vmem, size = 0x10000, scoped, tag = 'input window, operand 0']
    #allocation4 [shape = 's32[2]{0}', space=sflag, size = 0x8, scoped, tag = 'scoped memory for mlp_forward.1']
    #allocation5 [shape = 's32[2]{0}', space=sflag, size = 0x8, scoped, tag = 'scoped memory for mlp_forward.1']
    #allocation6 [shape = 'u8[131072]{0}', space=vmem, size = 0x20000, scoped, tag = 'input window, operand 1']
    #allocation7 [shape = 's32[2]{0}', space=sflag, size = 0x8, scoped, tag = 'scoped memory for mlp_forward.1']
    #allocation8 [shape = 'u8[131072]{0}', space=vmem, size = 0x20000, scoped, tag = 'input window, operand 3']
    #allocation9 [shape = 'u8[65536]{0}', space=vmem, size = 0x10000, scoped, tag = 'output window, operand 0']
    %10 = vsyncpa [#allocation4], 0
    %s11 = scalar_lea.sflag [#allocation4], 1
    %12 = vsyncpa %s11, 0
    %13 = vsyncpa [#allocation7], 0
    %s14 = scalar_lea.sflag [#allocation7], 1
    %15 = vsyncpa %s14, 0
    %16 = vsyncpa [#allocation5], 0
    %s17 = scalar_lea.sflag [#allocation5], 1
    %18 = vsyncpa %s17, 0
    loop: start=0, step=1, limit=10
    $region2: #{mlp_forward.1} parent=1 // loop_pre_header
      _
    $region3: #{mlp_forward.1} parent=1 // loop_header
      %s20 = sphi 0, %s24
      %p21 = scmp.ge.s32.totalorder %s20, 10
      %s27 = sphi 0, %s39
      %s28 = sphi 0, %s35
      %s29 = sphi 0, %s27
      %s30 = sphi 0, %s28
      %s31 = sphi 0, %s29
      %s32 = sphi 0, %s30
      %s42 = sphi 0, %s44
      %s45 = sphi 0, %s42
      %s46 = sphi 0, %s45
      %s62 = sphi 0, %s46
      %s68 = sphi 0, %s70
      %s71 = sphi 0, %s68
      %s72 = sphi 0, %s71
      %s88 = sphi 0, %s72
      %s94 = sphi 0, %s96
      %s97 = sphi 0, %s94
      %s98 = sphi 0, %s97
      %s114 = sphi 0, %s98
      %s120 = sphi 0, %s122
      %s123 = sphi 0, %s120
      %s124 = sphi 0, %s123
      %s140 = sphi 0, %s124
      %s144 = sphi 0, %s144
      %s146 = sphi 0, %s144
      %s147 = sphi 0, %s146
      %s161 = sphi 0, %s147
      %s167 = sphi 0, %s169
      %s170 = sphi 0, %s167
      %s171 = sphi 0, %s170
      %s187 = sphi 0, %s171
    $region4: #{mlp_forward.1} parent=1 // loop_header_branch
      %23 = sbr.rel (%p21) target = $region8
    $region5: #{mlp_forward.1} parent=1 // loop_body
      %s25 = ssub.s32 %s20, 1
      %s26 = ssub.s32 %s20, 2
      %s33 = sadd.s32 1, %s28
      %p34 = scmp.ge.s32.totalorder %s33, 4
      %s35 = scalar_select %p34, 0, %s33
      %s36 = sadd.s32 1, %s27
      %s37 = scalar_select %p34, %s36, %s27
      %p38 = scmp.ge.s32.totalorder %s37, 2
      %s39 = scalar_select %p38, 0, %s37
      %s40 = ssub.s32 %s27, %s39
      %p41 = scmp.eq.s32.totalorder %s40, 0
      %s43 = sadd.s32 %s42, 1
      %s44 = scalar_select %p41, %s42, %s43
      %p47 = pneg %p41
      %p48 = scmp.eq.s32.totalorder %s20, 7
      %p49 = por %p47, %p48
      %p50 = scmp.ne.s32.totalorder %s42, %s45
      %p51 = scmp.eq.s32.totalorder %s20, 0
      %p52 = por %p50, %p51
      %p53 = scmp.ne.s32.totalorder %s42, %s45
      %p54 = scmp.eq.s32.totalorder %s25, 7
      %p55 = por %p53, %p54
      %p56 = scmp.ne.s32.totalorder %s45, %s46
      %p57 = scmp.eq.s32.totalorder %s25, 0
      %p58 = por %p56, %p57
      %p59 = scmp.ne.s32.totalorder %s45, %s46
      %p60 = scmp.eq.s32.totalorder %s26, 7
      %p61 = por %p59, %p60
      %p63 = scmp.ne.s32.totalorder %s46, %s62
      %p64 = scmp.eq.s32.totalorder %s26, 0
      %p65 = por %p63, %p64
      %s66 = ssub.s32 %s28, %s35
      %p67 = scmp.eq.s32.totalorder %s66, 0
      %s69 = sadd.s32 %s68, 1
      %s70 = scalar_select %p67, %s68, %s69
      %p73 = pneg %p67
      %p74 = scmp.eq.s32.totalorder %s20, 7
      %p75 = por %p73, %p74
      %p76 = scmp.ne.s32.totalorder %s68, %s71
      %p77 = scmp.eq.s32.totalorder %s20, 0
      %p78 = por %p76, %p77
      %p79 = scmp.ne.s32.totalorder %s68, %s71
      %p80 = scmp.eq.s32.totalorder %s25, 7
      %p81 = por %p79, %p80
      %p82 = scmp.ne.s32.totalorder %s71, %s72
      %p83 = scmp.eq.s32.totalorder %s25, 0
      %p84 = por %p82, %p83
      %p85 = scmp.ne.s32.totalorder %s71, %s72
      %p86 = scmp.eq.s32.totalorder %s26, 7
      %p87 = por %p85, %p86
      %p89 = scmp.ne.s32.totalorder %s72, %s88
      %p90 = scmp.eq.s32.totalorder %s26, 0
      %p91 = por %p89, %p90
      %s92 = ssub.s32 %s28, %s35
      %p93 = scmp.eq.s32.totalorder %s92, 0
      %s95 = sadd.s32 %s94, 1
      %s96 = scalar_select %p93, %s94, %s95
      %p99 = pneg %p93
      %p100 = scmp.eq.s32.totalorder %s20, 7
      %p101 = por %p99, %p100
      %p102 = scmp.ne.s32.totalorder %s94, %s97
      %p103 = scmp.eq.s32.totalorder %s20, 0
      %p104 = por %p102, %p103
      %p105 = scmp.ne.s32.totalorder %s94, %s97
      %p106 = scmp.eq.s32.totalorder %s25, 7
      %p107 = por %p105, %p106
      %p108 = scmp.ne.s32.totalorder %s97, %s98
      %p109 = scmp.eq.s32.totalorder %s25, 0
      %p110 = por %p108, %p109
      %p111 = scmp.ne.s32.totalorder %s97, %s98
      %p112 = scmp.eq.s32.totalorder %s26, 7
      %p113 = por %p111, %p112
      %p115 = scmp.ne.s32.totalorder %s98, %s114
      %p116 = scmp.eq.s32.totalorder %s26, 0
      %p117 = por %p115, %p116
      %s118 = ssub.s32 %s28, %s35
      %p119 = scmp.eq.s32.totalorder %s118, 0
      %s121 = sadd.s32 %s120, 1
      %s122 = scalar_select %p119, %s120, %s121
      %p125 = pneg %p119
      %p126 = scmp.eq.s32.totalorder %s20, 7
      %p127 = por %p125, %p126
      %p128 = scmp.ne.s32.totalorder %s120, %s123
      %p129 = scmp.eq.s32.totalorder %s20, 0
      %p130 = por %p128, %p129
      %p131 = scmp.ne.s32.totalorder %s120, %s123
      %p132 = scmp.eq.s32.totalorder %s25, 7
      %p133 = por %p131, %p132
      %p134 = scmp.ne.s32.totalorder %s123, %s124
      %p135 = scmp.eq.s32.totalorder %s25, 0
      %p136 = por %p134, %p135
      %p137 = scmp.ne.s32.totalorder %s123, %s124
      %p138 = scmp.eq.s32.totalorder %s26, 7
      %p139 = por %p137, %p138
      %p141 = scmp.ne.s32.totalorder %s124, %s140
      %p142 = scmp.eq.s32.totalorder %s26, 0
      %p143 = por %p141, %p142
      %s145 = sadd.s32 %s144, 1
      %p148 = scmp.eq.s32.totalorder %s20, 7
      %p149 = scmp.ne.s32.totalorder %s144, %s146
      %p150 = scmp.eq.s32.totalorder %s20, 0
      %p151 = por %p149, %p150
      %p152 = scmp.ne.s32.totalorder %s144, %s146
      %p153 = scmp.eq.s32.totalorder %s25, 7
      %p154 = por %p152, %p153
      %p155 = scmp.ne.s32.totalorder %s146, %s147
      %p156 = scmp.eq.s32.totalorder %s25, 0
      %p157 = por %p155, %p156
      %p158 = scmp.ne.s32.totalorder %s146, %s147
      %p159 = scmp.eq.s32.totalorder %s26, 7
      %p160 = por %p158, %p159
      %p162 = scmp.ne.s32.totalorder %s147, %s161
      %p163 = scmp.eq.s32.totalorder %s26, 0
      %p164 = por %p162, %p163
      %s165 = ssub.s32 %s27, %s39
      %p166 = scmp.eq.s32.totalorder %s165, 0
      %s168 = sadd.s32 %s167, 1
      %s169 = scalar_select %p166, %s167, %s168
      %p172 = pneg %p166
      %p173 = scmp.eq.s32.totalorder %s20, 7
      %p174 = por %p172, %p173
      %p175 = scmp.ne.s32.totalorder %s167, %s170
      %p176 = scmp.eq.s32.totalorder %s20, 0
      %p177 = por %p175, %p176
      %p178 = scmp.ne.s32.totalorder %s167, %s170
      %p179 = scmp.eq.s32.totalorder %s25, 7
      %p180 = por %p178, %p179
      %p181 = scmp.ne.s32.totalorder %s170, %s171
      %p182 = scmp.eq.s32.totalorder %s25, 0
      %p183 = por %p181, %p182
      %p184 = scmp.ne.s32.totalorder %s170, %s171
      %p185 = scmp.eq.s32.totalorder %s26, 7
      %p186 = por %p184, %p185
      %p188 = scmp.ne.s32.totalorder %s171, %s187
      %p189 = scmp.eq.s32.totalorder %s26, 0
      %p190 = por %p188, %p189
      %p191 = scmp.le.s32.totalorder 1, %s20
      %p192 = scmp.lt.s32.totalorder %s20, 9
      %p193 = pnand %p191, %p192
      %p194 = pneg %p193
      // Predicated region
      $region9: #{mlp_forward.1} parent=5 // pred_check
        _
      $region10: #{mlp_forward.1} parent=5 // pred_check_branch
        %196 = sbr.rel (%p193) target = $region12
      $region11: #{mlp_forward.1} parent=5 // pred_region
        %s197 = ssub.s32 %s20, 1
        // Predicated region
        $region13: #{mlp_forward.1} parent=11 // pred_check
          %p198 = pneg %p157
        $region14: #{mlp_forward.1} parent=11 // pred_check_branch
          %200 = sbr.rel (%p198) target = $region16
        $region15: #{mlp_forward.1} parent=11 // pred_region
          _
        $region16: #{mlp_forward.1} parent=11 // pred_fallthru
          _
      $region12: #{mlp_forward.1} parent=5 // pred_fallthru
        _
      %p201 = scmp.lt.s32.totalorder %s20, 8
      // Predicated region
      $region17: #{mlp_forward.1} parent=5 // pred_check
        %p202 = pneg %p201
      $region18: #{mlp_forward.1} parent=5 // pred_check_branch
        %204 = sbr.rel (%p202) target = $region20
      $region19: #{mlp_forward.1} parent=5 // pred_region
        // Predicated region
        $region21: #{mlp_forward.1} parent=19 // pred_check
          %p205 = pneg %p52
        $region22: #{mlp_forward.1} parent=19 // pred_check_branch
          %207 = sbr.rel (%p205) target = $region24
        $region23: #{mlp_forward.1} parent=19 // pred_region
          %s208 = sand.u32 %s42, 1
          %s209 = scalar_lea.sflag [#allocation4], %s208
          %s210 = sand.u32 %s42, 1
          %s211 = smul.addr %s210, 64
          %s212 = scalar_lea.vmem [#allocation3], %s211
          %s213 = smul.u32 8, %s27
          %s215 = ssub.s32 1024, 1024
          %216 = vsyncadd %s209, %s215
          %s217 = smul.addr %s213, 128
          %s218 = scalar_lea.hbm %s0, %s217
          %s219 = sshll.u32 %s212, 4
          %s220 = int_to_ptr.vmem [resolvable:$true] %s219
          %225 = dma.hbm_to_vmem [thread:$0]  %s218, 1024, %s220, %s209, 128, 128, 8
        $region24: #{mlp_forward.1} parent=19 // pred_fallthru
          _
        // Predicated region
        $region25: #{mlp_forward.1} parent=19 // pred_check
          %p226 = pneg %p78
        $region26: #{mlp_forward.1} parent=19 // pred_check_branch
          %228 = sbr.rel (%p226) target = $region28
        $region27: #{mlp_forward.1} parent=19 // pred_region
          %s229 = sand.u32 %s20, 1
          %s230 = scalar_lea.sflag [#allocation7], %s229
          %s231 = sand.u32 %s68, 1
          %s232 = smul.addr %s231, 128
          %s233 = scalar_lea.vmem [#allocation6], %s232
          %s235 = ssub.s32 2048, 2048
          %236 = vsyncadd %s230, %s235
          %s237 = smul.addr %s28, 128
          %s238 = scalar_lea.hbm %s1, %s237
          %s239 = sshll.u32 %s233, 4
          %s240 = int_to_ptr.vmem [resolvable:$true] %s239
          %245 = dma.hbm_to_vmem [thread:$0]  %s238, 2048, %s240, %s230, 512, 128, 8
        $region28: #{mlp_forward.1} parent=19 // pred_fallthru
          _
        // Predicated region
        $region29: #{mlp_forward.1} parent=19 // pred_check
          %p246 = pneg %p104
        $region30: #{mlp_forward.1} parent=19 // pred_check_branch
          %248 = sbr.rel (%p246) target = $region32
        $region31: #{mlp_forward.1} parent=19 // pred_region
          %p249 = scmp.lt.s32.totalorder %s28, 3
          %s250 = scalar_select %p249, %s28, 3
          %s251 = scalar_lea.vmem %s2, %s250
        $region32: #{mlp_forward.1} parent=19 // pred_fallthru
          _
        // Predicated region
        $region33: #{mlp_forward.1} parent=19 // pred_check
          %p252 = pneg %p130
        $region34: #{mlp_forward.1} parent=19 // pred_check_branch
          %254 = sbr.rel (%p252) target = $region36
        $region35: #{mlp_forward.1} parent=19 // pred_region
          %s255 = sand.u32 %s20, 1
          %s256 = scalar_lea.sflag [#allocation7], %s255
          %s257 = sand.u32 %s120, 1
          %s258 = smul.addr %s257, 128
          %s259 = scalar_lea.vmem [#allocation8], %s258
          %s260 = smul.u32 16, %s28
          %s262 = ssub.s32 2048, 2048
          %263 = vsyncadd %s256, %s262
          %s264 = smul.addr %s260, 128
          %s265 = scalar_lea.hbm %s3, %s264
          %s266 = sshll.u32 %s259, 4
          %s267 = int_to_ptr.vmem [resolvable:$true] %s266
          %272 = dma.hbm_to_vmem [thread:$0]  %s265, 2048, %s267, %s256, 128, 128, 8
        $region36: #{mlp_forward.1} parent=19 // pred_fallthru
          _
      $region20: #{mlp_forward.1} parent=5 // pred_fallthru
        _
      %p273 = scmp.le.s32.totalorder 1, %s20
      %p274 = scmp.lt.s32.totalorder %s20, 9
      %p275 = pnand %p273, %p274
      %p276 = pneg %p275
      // Predicated region
      $region37: #{mlp_forward.1} parent=5 // pred_check
        _
      $region38: #{mlp_forward.1} parent=5 // pred_check_branch
        %278 = sbr.rel (%p275) target = $region40
      $region39: #{mlp_forward.1} parent=5 // pred_region
        %s279 = ssub.s32 %s20, 1
        %s280 = sand.u32 %s45, 1
        %s281 = scalar_lea.sflag [#allocation4], %s280
        %s282 = sand.u32 %s45, 1
        %s283 = smul.addr %s282, 64
        %s284 = scalar_lea.vmem [#allocation3], %s283
        // Predicated region
        $region41: #{mlp_forward.1} parent=39 // pred_check
          %p285 = pneg %p58
        $region42: #{mlp_forward.1} parent=39 // pred_check_branch
          %287 = sbr.rel (%p285) target = $region44
        $region43: #{mlp_forward.1} parent=39 // pred_region
          %288 = dma.done %s281, 1024
        $region44: #{mlp_forward.1} parent=39 // pred_fallthru
          _
        %s289 = sand.u32 %s25, 1
        %s290 = scalar_lea.sflag [#allocation7], %s289
        %s291 = sand.u32 %s71, 1
        %s292 = smul.addr %s291, 128
        %s293 = scalar_lea.vmem [#allocation6], %s292
        // Predicated region
        $region45: #{mlp_forward.1} parent=39 // pred_check
          %p294 = pneg %p84
        $region46: #{mlp_forward.1} parent=39 // pred_check_branch
          %296 = sbr.rel (%p294) target = $region48
        $region47: #{mlp_forward.1} parent=39 // pred_region
          %297 = dma.done %s290, 2048
        $region48: #{mlp_forward.1} parent=39 // pred_fallthru
          _
        %s298 = sand.u32 %s25, 1
        %s299 = scalar_lea.sflag [#allocation7], %s298
        %s300 = sand.u32 %s123, 1
        %s301 = smul.addr %s300, 128
        %s302 = scalar_lea.vmem [#allocation8], %s301
        // Predicated region
        $region49: #{mlp_forward.1} parent=39 // pred_check
          %p303 = pneg %p136
        $region50: #{mlp_forward.1} parent=39 // pred_check_branch
          %305 = sbr.rel (%p303) target = $region52
        $region51: #{mlp_forward.1} parent=39 // pred_region
          %306 = dma.done %s299, 2048
        $region52: #{mlp_forward.1} parent=39 // pred_fallthru
          _
        %s307 = sand.u32 %s45, 1
        %s308 = scalar_lea.sflag [#allocation4], %s307
        %s309 = sand.u32 %s45, 1
        %s310 = smul.addr %s309, 64
        %s311 = scalar_lea.vmem [#allocation3], %s310
        %p312 = pneg %p58
        %p313 = pneg %p55
        %s314 = sand.u32 %s25, 1
        %s315 = scalar_lea.sflag [#allocation7], %s314
        %s316 = sand.u32 %s71, 1
        %s317 = smul.addr %s316, 128
        %s318 = scalar_lea.vmem [#allocation6], %s317
        %p319 = pneg %p84
        %p320 = pneg %p81
        %p321 = scmp.lt.s32.totalorder %s30, 3
        %s322 = scalar_select %p321, %s30, 3
        %s323 = scalar_lea.vmem %s2, %s322
        %p324 = pneg %p110
        %p325 = pneg %p107
        %s326 = sand.u32 %s25, 1
        %s327 = scalar_lea.sflag [#allocation7], %s326
        %s328 = sand.u32 %s123, 1
        %s329 = smul.addr %s328, 128
        %s330 = scalar_lea.vmem [#allocation8], %s329
        %p331 = pneg %p136
        %p332 = pneg %p133
        %p333 = pneg %p157
        %p334 = pneg %p154
        %p335 = pneg %p183
        %p336 = pneg %p180
        %s337 = sand.u32 %s170, 1
        %s338 = scalar_lea.sflag [#allocation5], %s337
        %s339 = sand.u32 %s170, 1
        %s340 = smul.addr %s339, 64
        %s341 = scalar_lea.vmem [#allocation9], %s340
        %s342 = smul.u32 8, %s29
        %p343 = scmp.lt.s32.totalorder %s30, 3
        %s344 = scalar_select %p343, %s30, 3
        %s345 = scalar_lea.vmem %s2, %s344
        %s346 = smul.u32 16, %s30
        %s347 = smul.u32 8, %s29
        %p348 = scmp.eq.s32.totalorder %s30, 0
        // Predicated region
        $region53: #{mlp_forward.1} parent=39 // pred_check
          %p349 = pneg %p348
        $region54: #{mlp_forward.1} parent=39 // pred_check_branch
          %351 = sbr.rel (%p349) target = $region56
        $region55: #{mlp_forward.1} parent=39 // pred_region
          %v352 = vld [vmem:[%s4] sm:$0x1]
          %v354 = vlaneseq
          %v355 = vshrl.u32 %v354, 7
          %v356 = vsub.s32 0, %v355
          %v357 = vrot.slane %v352, %v356
          %359 = vst [vmem:[#allocation2] sm:$0xff] %v357
          %360 = vst [vmem:[#allocation2 + $0x8] sm:$0xff] %v357
          %361 = vst [vmem:[#allocation2 + $0x10] sm:$0xff] %v357
          %362 = vst [vmem:[#allocation2 + $0x18] sm:$0xff] %v357
          %363 = vst [vmem:[#allocation2 + $0x20] sm:$0xff] %v357
          %364 = vst [vmem:[#allocation2 + $0x28] sm:$0xff] %v357
          %365 = vst [vmem:[#allocation2 + $0x30] sm:$0xff] %v357
          %366 = vst [vmem:[#allocation2 + $0x38] sm:$0xff] %v357
        $region56: #{mlp_forward.1} parent=39 // pred_fallthru
          _
        %v367 = vld [vmem:[%s284] sm:$0xff]
        %v368 = vld [vmem:[%s284 + $0x8] sm:$0xff]
        %v369 = vld [vmem:[%s284 + $0x10] sm:$0xff]
        %v370 = vld [vmem:[%s284 + $0x18] sm:$0xff]
        %v371 = vld [vmem:[%s284 + $0x20] sm:$0xff]
        %v372 = vld [vmem:[%s284 + $0x28] sm:$0xff]
        %v373 = vld [vmem:[%s284 + $0x30] sm:$0xff]
        %v374 = vld [vmem:[%s284 + $0x38] sm:$0xff]
        %v375 = vld [vmem:[%s293] sm:$0xff]
        %v376 = vld [vmem:[%s293 + $0x8] sm:$0xff]
        %v377 = vld [vmem:[%s293 + $0x10] sm:$0xff]
        %v378 = vld [vmem:[%s293 + $0x18] sm:$0xff]
        %v379 = vld [vmem:[%s293 + $0x20] sm:$0xff]
        %v380 = vld [vmem:[%s293 + $0x28] sm:$0xff]
        %v381 = vld [vmem:[%s293 + $0x30] sm:$0xff]
        %v382 = vld [vmem:[%s293 + $0x38] sm:$0xff]
        %v383 = vld [vmem:[%s293 + $0x40] sm:$0xff]
        %v384 = vld [vmem:[%s293 + $0x48] sm:$0xff]
        %v385 = vld [vmem:[%s293 + $0x50] sm:$0xff]
        %v386 = vld [vmem:[%s293 + $0x58] sm:$0xff]
        %v387 = vld [vmem:[%s293 + $0x60] sm:$0xff]
        %v388 = vld [vmem:[%s293 + $0x68] sm:$0xff]
        %v389 = vld [vmem:[%s293 + $0x70] sm:$0xff]
        %v390 = vld [vmem:[%s293 + $0x78] sm:$0xff]
        %v391 = vld [vmem:[%s345] sm:$0x1]
        %v393 = vlaneseq
        %v394 = vshrl.u32 %v393, 7
        %v395 = vsub.s32 0, %v394
        %v396 = vrot.slane %v391, %v395
        %398 = vmatprep.subr.mxu0 0.0
        %399 = vmatpush1.msra.mxu0 %v375
        %400 = vmatprep.subr.mxu0 0.0
        %401 = vmatpush1.msra.mxu0 %v376
        %402 = vmatprep.subr.mxu0 0.0
        %403 = vmatpush1.msra.mxu0 %v377
        %404 = vmatprep.subr.mxu0 0.0
        %405 = vmatpush1.msra.mxu0 %v378
        %406 = vmatprep.subr.mxu0 0.0
        %407 = vmatpush1.msra.mxu0 %v379
        %408 = vmatprep.subr.mxu0 0.0
        %409 = vmatpush1.msra.mxu0 %v380
        %410 = vmatprep.subr.mxu0 0.0
        %411 = vmatpush1.msra.mxu0 %v381
        %412 = vmatprep.subr.mxu0 0.0
        %413 = vmatpush1.msra.mxu0 %v382
        %414 = vmatprep.subr.mxu0 0.0
        %415 = vmatpush1.msra.mxu0 %v383
        %416 = vmatprep.subr.mxu0 0.0
        %417 = vmatpush1.msra.mxu0 %v384
        %418 = vmatprep.subr.mxu0 0.0
        %419 = vmatpush1.msra.mxu0 %v385
        %420 = vmatprep.subr.mxu0 0.0
        %421 = vmatpush1.msra.mxu0 %v386
        %422 = vmatprep.subr.mxu0 0.0
        %423 = vmatpush1.msra.mxu0 %v387
        %424 = vmatprep.subr.mxu0 0.0
        %425 = vmatpush1.msra.mxu0 %v388
        %426 = vmatprep.subr.mxu0 0.0
        %427 = vmatpush1.msra.mxu0 %v389
        %428 = vmatprep.subr.mxu0 0.0
        %429 = vmatpush1.msra.mxu0 %v390
        %430 = vmatprep.subr.mxu0 0.0
        %431 = vmatpush1.msra.mxu0 0.0
        %432 = vmatprep.subr.mxu0 0.0
        %433 = vmatpush1.msra.mxu0 0.0
        %434 = vmatprep.subr.mxu0 0.0
        %435 = vmatpush1.msra.mxu0 0.0
        %436 = vmatprep.subr.mxu0 0.0
        %437 = vmatpush1.msra.mxu0 0.0
        %438 = vmatprep.subr.mxu0 0.0
        %439 = vmatpush1.msra.mxu0 0.0
        %440 = vmatprep.subr.mxu0 0.0
        %441 = vmatpush1.msra.mxu0 0.0
        %442 = vmatprep.subr.mxu0 0.0
        %443 = vmatpush1.msra.mxu0 0.0
        %444 = vmatprep.subr.mxu0 0.0
        %445 = vmatpush1.msra.mxu0 0.0
        %446 = vmatprep.subr.mxu0 0.0
        %447 = vmatpush1.msra.mxu0 0.0
        %448 = vmatprep.subr.mxu0 0.0
        %449 = vmatpush1.msra.mxu0 0.0
        %450 = vmatprep.subr.mxu0 0.0
        %451 = vmatpush1.msra.mxu0 0.0
        %452 = vmatprep.subr.mxu0 0.0
        %453 = vmatpush1.msra.mxu0 0.0
        %454 = vmatprep.subr.mxu0 0.0
        %455 = vmatpush1.msra.mxu0 0.0
        %456 = vmatprep.subr.mxu0 0.0
        %457 = vmatpush1.msra.mxu0 0.0
        %458 = vmatprep.subr.mxu0 0.0
        %459 = vmatpush1.msra.mxu0 0.0
        %460 = vmatprep.subr.mxu0 0.0
        %461 = vmatpush1.msra.mxu0 0.0
        %462 = vmatprep.mubr.f32.mxu0 0.0
        %463 = vmatmul.mubr.f32.gmra.mrb[0].mxu0 %v367
        %v464 = vpop.f32.mrb[0].mxu0
        %v465 = vadd.f32 %v396, %v464
        %v466 = vpop.f32.mrb[0].mxu0
        %467 = vmatprep.mubr.f32.mxu0 0.0
        %468 = vmatmul.mubr.f32.gmra.mrb[0].mxu0 %v368
        %v469 = vpop.f32.mrb[0].mxu0
        %v470 = vadd.f32 %v396, %v469
        %v471 = vpop.f32.mrb[0].mxu0
        %472 = vmatprep.mubr.f32.mxu0 0.0
        %473 = vmatmul.mubr.f32.gmra.mrb[0].mxu0 %v369
        %v474 = vpop.f32.mrb[0].mxu0
        %v475 = vadd.f32 %v396, %v474
        %v476 = vpop.f32.mrb[0].mxu0
        %477 = vmatprep.mubr.f32.mxu0 0.0
        %478 = vmatmul.mubr.f32.gmra.mrb[0].mxu0 %v370
        %v479 = vpop.f32.mrb[0].mxu0
        %v480 = vadd.f32 %v396, %v479
        %v481 = vpop.f32.mrb[0].mxu0
        %482 = vmatprep.mubr.f32.mxu0 0.0
        %483 = vmatmul.mubr.f32.gmra.mrb[0].mxu0 %v371
        %v484 = vpop.f32.mrb[0].mxu0
        %v485 = vadd.f32 %v396, %v484
        %v486 = vpop.f32.mrb[0].mxu0
        %487 = vmatprep.mubr.f32.mxu0 0.0
        %488 = vmatmul.mubr.f32.gmra.mrb[0].mxu0 %v372
        %v489 = vpop.f32.mrb[0].mxu0
        %v490 = vadd.f32 %v396, %v489
        %v491 = vpop.f32.mrb[0].mxu0
        %492 = vmatprep.mubr.f32.mxu0 0.0
        %493 = vmatmul.mubr.f32.gmra.mrb[0].mxu0 %v373
        %v494 = vpop.f32.mrb[0].mxu0
        %v495 = vadd.f32 %v396, %v494
        %v496 = vpop.f32.mrb[0].mxu0
        %497 = vmatprep.mubr.f32.mxu0 0.0
        %498 = vmatmul.mubr.f32.gmra.mrb[0].mxu0 %v374
        %v499 = vpop.f32.mrb[0].mxu0
        %v500 = vadd.f32 %v396, %v499
        %v501 = vpop.f32.mrb[0].mxu0
        %502 = vdwg.mxu0
        %v503 = vmul.f32 %v465, 0.5
        %v504 = vmul.f32 %v470, 0.5
        %v505 = vmul.f32 %v475, 0.5
        %v506 = vmul.f32 %v480, 0.5
        %v507 = vmul.f32 %v485, 0.5
        %v508 = vmul.f32 %v490, 0.5
        %v509 = vmul.f32 %v495, 0.5
        %v510 = vmul.f32 %v500, 0.5
        %v511 = vmul.f32 %v465, %v465
        %v512 = vmul.f32 %v470, %v470
        %v513 = vmul.f32 %v475, %v475
        %v514 = vmul.f32 %v480, %v480
        %v515 = vmul.f32 %v485, %v485
        %v516 = vmul.f32 %v490, %v490
        %v517 = vmul.f32 %v495, %v495
        %v518 = vmul.f32 %v500, %v500
        %v519 = vmul.f32 %v511, 0.035677407
        %v520 = vmul.f32 %v512, 0.035677407
        %v521 = vmul.f32 %v513, 0.035677407
        %v522 = vmul.f32 %v514, 0.035677407
        %v523 = vmul.f32 %v515, 0.035677407
        %v524 = vmul.f32 %v516, 0.035677407
        %v525 = vmul.f32 %v517, 0.035677407
        %v526 = vmul.f32 %v518, 0.035677407
        %v527 = vadd.f32 %v519, 0.7978846
        %v528 = vadd.f32 %v520, 0.7978846
        %v529 = vadd.f32 %v521, 0.7978846
        %v530 = vadd.f32 %v522, 0.7978846
        %v531 = vadd.f32 %v523, 0.7978846
        %v532 = vadd.f32 %v524, 0.7978846
        %v533 = vadd.f32 %v525, 0.7978846
        %v534 = vadd.f32 %v526, 0.7978846
        %v535 = vmul.f32 %v465, %v527
        %v536 = vmul.f32 %v470, %v528
        %v537 = vmul.f32 %v475, %v529
        %v538 = vmul.f32 %v480, %v530
        %v539 = vmul.f32 %v485, %v531
        %v540 = vmul.f32 %v490, %v532
        %v541 = vmul.f32 %v495, %v533
        %v542 = vmul.f32 %v500, %v534
        %v543 = vtanh.pop %v535
        %v544 = vtanh.pop %v536
        %v545 = vtanh.pop %v537
        %v546 = vtanh.pop %v538
        %v547 = vtanh.pop %v539
        %v548 = vtanh.pop %v540
        %v549 = vtanh.pop %v541
        %v550 = vtanh.pop %v542
        %v551 = vadd.f32 %v543, 1.0
        %v552 = vadd.f32 %v544, 1.0
        %v553 = vadd.f32 %v545, 1.0
        %v554 = vadd.f32 %v546, 1.0
        %v555 = vadd.f32 %v547, 1.0
        %v556 = vadd.f32 %v548, 1.0
        %v557 = vadd.f32 %v549, 1.0
        %v558 = vadd.f32 %v550, 1.0
        %v559 = vmul.f32 %v503, %v551
        %v560 = vmul.f32 %v504, %v552
        %v561 = vmul.f32 %v505, %v553
        %v562 = vmul.f32 %v506, %v554
        %v563 = vmul.f32 %v507, %v555
        %v564 = vmul.f32 %v508, %v556
        %v565 = vmul.f32 %v509, %v557
        %v566 = vmul.f32 %v510, %v558
        %v567 = vld [vmem:[#allocation2] sm:$0xff]
        %v568 = vld [vmem:[#allocation2 + $0x8] sm:$0xff]
        %v569 = vld [vmem:[#allocation2 + $0x10] sm:$0xff]
        %v570 = vld [vmem:[#allocation2 + $0x18] sm:$0xff]
        %v571 = vld [vmem:[#allocation2 + $0x20] sm:$0xff]
        %v572 = vld [vmem:[#allocation2 + $0x28] sm:$0xff]
        %v573 = vld [vmem:[#allocation2 + $0x30] sm:$0xff]
        %v574 = vld [vmem:[#allocation2 + $0x38] sm:$0xff]
        %v575 = vld [vmem:[%s302] sm:$0xff]
        %v576 = vld [vmem:[%s302 + $0x8] sm:$0xff]
        %v577 = vld [vmem:[%s302 + $0x10] sm:$0xff]
        %v578 = vld [vmem:[%s302 + $0x18] sm:$0xff]
        %v579 = vld [vmem:[%s302 + $0x20] sm:$0xff]
        %v580 = vld [vmem:[%s302 + $0x28] sm:$0xff]
        %v581 = vld [vmem:[%s302 + $0x30] sm:$0xff]
        %v582 = vld [vmem:[%s302 + $0x38] sm:$0xff]
        %v583 = vld [vmem:[%s302 + $0x40] sm:$0xff]
        %v584 = vld [vmem:[%s302 + $0x48] sm:$0xff]
        %v585 = vld [vmem:[%s302 + $0x50] sm:$0xff]
        %v586 = vld [vmem:[%s302 + $0x58] sm:$0xff]
        %v587 = vld [vmem:[%s302 + $0x60] sm:$0xff]
        %v588 = vld [vmem:[%s302 + $0x68] sm:$0xff]
        %v589 = vld [vmem:[%s302 + $0x70] sm:$0xff]
        %v590 = vld [vmem:[%s302 + $0x78] sm:$0xff]
        %591 = vmatprep.subr.mxu0 0.0
        %592 = vmatpush1.msra.mxu0 %v575
        %593 = vmatprep.subr.mxu0 0.0
        %594 = vmatpush1.msra.mxu0 %v576
        %595 = vmatprep.subr.mxu0 0.0
        %596 = vmatpush1.msra.mxu0 %v577
        %597 = vmatprep.subr.mxu0 0.0
        %598 = vmatpush1.msra.mxu0 %v578
        %599 = vmatprep.subr.mxu0 0.0
        %600 = vmatpush1.msra.mxu0 %v579
        %601 = vmatprep.subr.mxu0 0.0
        %602 = vmatpush1.msra.mxu0 %v580
        %603 = vmatprep.subr.mxu0 0.0
        %604 = vmatpush1.msra.mxu0 %v581
        %605 = vmatprep.subr.mxu0 0.0
        %606 = vmatpush1.msra.mxu0 %v582
        %607 = vmatprep.subr.mxu0 0.0
        %608 = vmatpush1.msra.mxu0 %v583
        %609 = vmatprep.subr.mxu0 0.0
        %610 = vmatpush1.msra.mxu0 %v584
        %611 = vmatprep.subr.mxu0 0.0
        %612 = vmatpush1.msra.mxu0 %v585
        %613 = vmatprep.subr.mxu0 0.0
        %614 = vmatpush1.msra.mxu0 %v586
        %615 = vmatprep.subr.mxu0 0.0
        %616 = vmatpush1.msra.mxu0 %v587
        %617 = vmatprep.subr.mxu0 0.0
        %618 = vmatpush1.msra.mxu0 %v588
        %619 = vmatprep.subr.mxu0 0.0
        %620 = vmatpush1.msra.mxu0 %v589
        %621 = vmatprep.subr.mxu0 0.0
        %622 = vmatpush1.msra.mxu0 %v590
        %623 = vmatprep.subr.mxu0 0.0
        %624 = vmatpush1.msra.mxu0 0.0
        %625 = vmatprep.subr.mxu0 0.0
        %626 = vmatpush1.msra.mxu0 0.0
        %627 = vmatprep.subr.mxu0 0.0
        %628 = vmatpush1.msra.mxu0 0.0
        %629 = vmatprep.subr.mxu0 0.0
        %630 = vmatpush1.msra.mxu0 0.0
        %631 = vmatprep.subr.mxu0 0.0
        %632 = vmatpush1.msra.mxu0 0.0
        %633 = vmatprep.subr.mxu0 0.0
        %634 = vmatpush1.msra.mxu0 0.0
        %635 = vmatprep.subr.mxu0 0.0
        %636 = vmatpush1.msra.mxu0 0.0
        %637 = vmatprep.subr.mxu0 0.0
        %638 = vmatpush1.msra.mxu0 0.0
        %639 = vmatprep.subr.mxu0 0.0
        %640 = vmatpush1.msra.mxu0 0.0
        %641 = vmatprep.subr.mxu0 0.0
        %642 = vmatpush1.msra.mxu0 0.0
        %643 = vmatprep.subr.mxu0 0.0
        %644 = vmatpush1.msra.mxu0 0.0
        %645 = vmatprep.subr.mxu0 0.0
        %646 = vmatpush1.msra.mxu0 0.0
        %647 = vmatprep.subr.mxu0 0.0
        %648 = vmatpush1.msra.mxu0 0.0
        %649 = vmatprep.subr.mxu0 0.0
        %650 = vmatpush1.msra.mxu0 0.0
        %651 = vmatprep.subr.mxu0 0.0
        %652 = vmatpush1.msra.mxu0 0.0
        %653 = vmatprep.subr.mxu0 0.0
        %654 = vmatpush1.msra.mxu0 0.0
        %655 = vmatprep.mubr.f32.mxu0 0.0
        %656 = vmatmul.mubr.f32.gmra.mrb[0].mxu0 %v559
        %v657 = vpop.f32.mrb[0].mxu0
        %v658 = vadd.f32 0.0, %v657
        %v659 = vpop.f32.mrb[0].mxu0
        %660 = vmatprep.mubr.f32.mxu0 0.0
        %661 = vmatmul.mubr.f32.gmra.mrb[0].mxu0 %v560
        %v662 = vpop.f32.mrb[0].mxu0
        %v663 = vadd.f32 0.0, %v662
        %v664 = vpop.f32.mrb[0].mxu0
        %665 = vmatprep.mubr.f32.mxu0 0.0
        %666 = vmatmul.mubr.f32.gmra.mrb[0].mxu0 %v561
        %v667 = vpop.f32.mrb[0].mxu0
        %v668 = vadd.f32 0.0, %v667
        %v669 = vpop.f32.mrb[0].mxu0
        %670 = vmatprep.mubr.f32.mxu0 0.0
        %671 = vmatmul.mubr.f32.gmra.mrb[0].mxu0 %v562
        %v672 = vpop.f32.mrb[0].mxu0
        %v673 = vadd.f32 0.0, %v672
        %v674 = vpop.f32.mrb[0].mxu0
        %675 = vmatprep.mubr.f32.mxu0 0.0
        %676 = vmatmul.mubr.f32.gmra.mrb[0].mxu0 %v563
        %v677 = vpop.f32.mrb[0].mxu0
        %v678 = vadd.f32 0.0, %v677
        %v679 = vpop.f32.mrb[0].mxu0
        %680 = vmatprep.mubr.f32.mxu0 0.0
        %681 = vmatmul.mubr.f32.gmra.mrb[0].mxu0 %v564
        %v682 = vpop.f32.mrb[0].mxu0
        %v683 = vadd.f32 0.0, %v682
        %v684 = vpop.f32.mrb[0].mxu0
        %685 = vmatprep.mubr.f32.mxu0 0.0
        %686 = vmatmul.mubr.f32.gmra.mrb[0].mxu0 %v565
        %v687 = vpop.f32.mrb[0].mxu0
        %v688 = vadd.f32 0.0, %v687
        %v689 = vpop.f32.mrb[0].mxu0
        %690 = vmatprep.mubr.f32.mxu0 0.0
        %691 = vmatmul.mubr.f32.gmra.mrb[0].mxu0 %v566
        %v692 = vpop.f32.mrb[0].mxu0
        %v693 = vadd.f32 0.0, %v692
        %v694 = vpop.f32.mrb[0].mxu0
        %695 = vdwg.mxu0
        %v696 = vadd.f32 %v567, %v658
        %v697 = vadd.f32 %v568, %v663
        %v698 = vadd.f32 %v569, %v668
        %v699 = vadd.f32 %v570, %v673
        %v700 = vadd.f32 %v571, %v678
        %v701 = vadd.f32 %v572, %v683
        %v702 = vadd.f32 %v573, %v688
        %v703 = vadd.f32 %v574, %v693
        %704 = vst [vmem:[#allocation2] sm:$0xff] %v696
        %705 = vst [vmem:[#allocation2 + $0x8] sm:$0xff] %v697
        %706 = vst [vmem:[#allocation2 + $0x10] sm:$0xff] %v698
        %707 = vst [vmem:[#allocation2 + $0x18] sm:$0xff] %v699
        %708 = vst [vmem:[#allocation2 + $0x20] sm:$0xff] %v700
        %709 = vst [vmem:[#allocation2 + $0x28] sm:$0xff] %v701
        %710 = vst [vmem:[#allocation2 + $0x30] sm:$0xff] %v702
        %711 = vst [vmem:[#allocation2 + $0x38] sm:$0xff] %v703
        %p712 = scmp.eq.s32.totalorder %s30, 3
        // Predicated region
        $region57: #{mlp_forward.1} parent=39 // pred_check
          %p713 = pneg %p712
        $region58: #{mlp_forward.1} parent=39 // pred_check_branch
          %715 = sbr.rel (%p713) target = $region60
        $region59: #{mlp_forward.1} parent=39 // pred_region
          %v716 = vld [vmem:[#allocation2] sm:$0xff]
          %v717 = vld [vmem:[#allocation2 + $0x8] sm:$0xff]
          %v718 = vld [vmem:[#allocation2 + $0x10] sm:$0xff]
          %v719 = vld [vmem:[#allocation2 + $0x18] sm:$0xff]
          %v720 = vld [vmem:[#allocation2 + $0x20] sm:$0xff]
          %v721 = vld [vmem:[#allocation2 + $0x28] sm:$0xff]
          %v722 = vld [vmem:[#allocation2 + $0x30] sm:$0xff]
          %v723 = vld [vmem:[#allocation2 + $0x38] sm:$0xff]
          %724 = vst [vmem:[%s341] sm:$0xff] %v716
          %725 = vst [vmem:[%s341 + $0x8] sm:$0xff] %v717
          %726 = vst [vmem:[%s341 + $0x10] sm:$0xff] %v718
          %727 = vst [vmem:[%s341 + $0x18] sm:$0xff] %v719
          %728 = vst [vmem:[%s341 + $0x20] sm:$0xff] %v720
          %729 = vst [vmem:[%s341 + $0x28] sm:$0xff] %v721
          %730 = vst [vmem:[%s341 + $0x30] sm:$0xff] %v722
          %731 = vst [vmem:[%s341 + $0x38] sm:$0xff] %v723
        $region60: #{mlp_forward.1} parent=39 // pred_fallthru
          _
        %s732 = sand.u32 %s170, 1
        %s733 = scalar_lea.sflag [#allocation5], %s732
        %s734 = sand.u32 %s170, 1
        %s735 = smul.addr %s734, 64
        %s736 = scalar_lea.vmem [#allocation9], %s735
        // Predicated region
        $region61: #{mlp_forward.1} parent=39 // pred_check
          %p737 = pneg %p180
        $region62: #{mlp_forward.1} parent=39 // pred_check_branch
          %739 = sbr.rel (%p737) target = $region64
        $region63: #{mlp_forward.1} parent=39 // pred_region
          %s740 = smul.u32 8, %s29
          %s742 = ssub.s32 1024, 1024
          %743 = vsyncadd %s733, %s742
          %s744 = smul.addr %s740, 128
          %s745 = scalar_lea.hbm %s5, %s744
          %s746 = sshll.u32 %s736, 4
          %s747 = int_to_ptr.vmem [resolvable:$true] %s746
          %752 = dma.vmem_to_hbm [thread:$0]  %s747, 1024, %s745, %s733, 128, 128, 8
        $region64: #{mlp_forward.1} parent=39 // pred_fallthru
          _
      $region40: #{mlp_forward.1} parent=5 // pred_fallthru
        _
      %p753 = scmp.le.s32.totalorder 2, %s20
      // Predicated region
      $region65: #{mlp_forward.1} parent=5 // pred_check
        %p754 = pneg %p753
      $region66: #{mlp_forward.1} parent=5 // pred_check_branch
        %756 = sbr.rel (%p754) target = $region68
      $region67: #{mlp_forward.1} parent=5 // pred_region
        %s757 = ssub.s32 %s20, 2
        // Predicated region
        $region69: #{mlp_forward.1} parent=67 // pred_check
          %p758 = pneg %p186
        $region70: #{mlp_forward.1} parent=67 // pred_check_branch
          %760 = sbr.rel (%p758) target = $region72
        $region71: #{mlp_forward.1} parent=67 // pred_region
          %s761 = sand.u32 %s171, 1
          %s762 = scalar_lea.sflag [#allocation5], %s761
          %s763 = sand.u32 %s171, 1
          %s764 = smul.addr %s763, 64
          %s765 = scalar_lea.vmem [#allocation9], %s764
          %766 = dma.done %s762, 1024
        $region72: #{mlp_forward.1} parent=67 // pred_fallthru
          _
      $region68: #{mlp_forward.1} parent=5 // pred_fallthru
        _
    $region6: #{mlp_forward.1} parent=1 // loop_footer
      %s24 = sadd.s32 1, %s20
    $region7: #{mlp_forward.1} parent=1 // loop_footer_branch
      %19 = sbr.rel target = $region3
    $region8: #{mlp_forward.1} parent=1 // loop_exit
      _
    %767 = vsyncpa [#allocation4], 1
    %s768 = scalar_lea.sflag [#allocation4], 1
    %769 = vsyncpa %s768, 1
    %770 = vsyncpa [#allocation7], 1
    %s771 = scalar_lea.sflag [#allocation7], 1
    %772 = vsyncpa %s771, 1
    %773 = vsyncpa [#allocation5], 1
    %s774 = scalar_lea.sflag [#allocation5], 1
    %775 = vsyncpa %s774, 1

</llo_original>
